<compile_context>
chip_gen: v7x
topology: tpu7x:2x2x1
jax: 0.10.0
libtpu: 0.0.40
codegen_flags: <defaults>
</compile_context>

<pallas_src>
import functools

import jax
import jax.numpy as jnp
from jax.experimental import pallas as pl
from jax.experimental.pallas import tpu as pltpu

_LANES = 128          # lane width of a vreg
_SUBLANES = 8         # sublane count of a vreg
_MAX_TILE_ROWS = 512  # 512*128*4B = 256 KiB per input tile (x3 inputs, x2 buffers)


def _mask_l1_kernel(eps, p_ref, g_ref, m_ref, out_ref, num_sc, den_sc):
    """One grid step: accumulate partial sums of |p-g|*m and m for this tile."""
    i = pl.program_id(0)

    @pl.when(i == 0)
    def _init():
        num_sc[...] = jnp.zeros_like(num_sc)
        den_sc[...] = jnp.zeros_like(den_sc)

    p = p_ref[...]
    g = g_ref[...]
    m = m_ref[...]
    # Full-tile reductions (VPU elementwise + XLU reduce); kernel is HBM-bound.
    num_sc[...] += jnp.sum(jnp.abs(p - g) * m, keepdims=True)
    den_sc[...] += jnp.sum(m, keepdims=True)

    @pl.when(i == pl.num_programs(0) - 1)
    def _finalize():
        out_ref[...] = num_sc[...] / (den_sc[...] + eps)


def mask_l1_loss(preds, gt, mask, eps=1e-6):
    """Masked L1 loss, matching the PyTorch MaskL1Loss.forward semantics."""
    assert preds.shape == gt.shape == mask.shape, (
        preds.shape, gt.shape, mask.shape)

    p = preds.reshape(-1).astype(jnp.float32)
    g = gt.reshape(-1).astype(jnp.float32)
    m = mask.reshape(-1).astype(jnp.float32)
    t = p.shape[0]

    # Lane-dense layout: pad to a whole number of (tile_rows, 128) tiles.
    rows = pl.cdiv(t, _LANES)
    rows = ((rows + _SUBLANES - 1) // _SUBLANES) * _SUBLANES
    tile_rows = min(rows, _MAX_TILE_ROWS)
    rows = ((rows + tile_rows - 1) // tile_rows) * tile_rows
    total = rows * _LANES
    pad = total - t
    if pad:
        # Zero-padded mask => padded elements contribute to neither sum.
        p = jnp.pad(p, (0, pad))
        g = jnp.pad(g, (0, pad))
        m = jnp.pad(m, (0, pad))

    p2 = p.reshape(rows, _LANES)
    g2 = g.reshape(rows, _LANES)
    m2 = m.reshape(rows, _LANES)

    grid = (rows // tile_rows,)
    tile_spec = pl.BlockSpec((tile_rows, _LANES), lambda i: (i, 0))

    out = pl.pallas_call(
        functools.partial(_mask_l1_kernel, float(eps)),
        out_shape=jax.ShapeDtypeStruct((1, 1), jnp.float32),
        grid=grid,
        in_specs=[tile_spec, tile_spec, tile_spec],
        out_specs=pl.BlockSpec((1, 1), lambda i: (0, 0)),
        scratch_shapes=[
            pltpu.VMEM((1, 1), jnp.float32),  # numerator accumulator
            pltpu.VMEM((1, 1), jnp.float32),  # denominator accumulator
        ],
        compiler_params=pltpu.CompilerParams(
            dimension_semantics=("arbitrary",),   # reduction axis
            vmem_limit_bytes=32 * 1024 * 1024,    # safe on v5e/v6e/v7x
        ),
    )(p2, g2, m2)

    return out[0, 0]


if __name__ == "__main__":
    key = jax.random.PRNGKey(0)
    kp, kg, km = jax.random.split(key, 3)

    shape = (2, 4, 16, 16)  # batch=2, channels=4, spatial=16x16
    preds = jax.random.uniform(kp, shape, jnp.float32)
    gt = jax.random.uniform(kg, shape, jnp.float32)
    mask = (jax.random.uniform(km, shape, jnp.float32) > 0.4).astype(jnp.float32)

    loss_fn = jax.jit(mask_l1_loss)
    loss = jax.block_until_ready(loss_fn(preds, gt, mask))

    # Pure-JAX reference for correctness.
    ref = jnp.sum(jnp.abs(preds - gt) * mask) / (jnp.sum(mask) + 1e-6)

    assert loss.shape == (), loss.shape
    assert jnp.isfinite(loss), loss
    assert jnp.allclose(loss, ref, rtol=1e-5, atol=1e-6), (loss, ref)
    print("KERNEL_OK")
</pallas_src>

<mosaic_0001>
module attributes {stable_mosaic.version = 11 : i64} {
  func.func @_mask_l1_kernel(%arg0: i32, %arg1: memref<16x128xf32, #tpu.memory_space<vmem>>, %arg2: memref<16x128xf32, #tpu.memory_space<vmem>>, %arg3: memref<16x128xf32, #tpu.memory_space<vmem>>, %arg4: memref<1x1xf32, #tpu.memory_space<vmem>>, %arg5: memref<1x1xf32, #tpu.memory_space<vmem>>, %arg6: memref<1x1xf32, #tpu.memory_space<vmem>>) attributes {dimension_semantics = [#tpu.dimension_semantics<arbitrary>], iteration_bounds = array<i64: 1>, scalar_prefetch = 0 : i64, scratch_operands = 2 : i64, tpu.core_type = #tpu.core_type<tc>, window_params = [{transform_indices = @transform_0, window_bounds = array<i64: 16, 128>}, {transform_indices = @transform_1, window_bounds = array<i64: 16, 128>}, {transform_indices = @transform_2, window_bounds = array<i64: 16, 128>}, {pipeline_mode = #tpu.pipeline_mode<synchronous>, transform_indices = @transform_3, window_bounds = array<i64: 1, 1>}]} {
    %c0_i32 = arith.constant 0 : i32
    %0 = arith.cmpi eq, %arg0, %c0_i32 : i32
    %1 = arith.extui %0 : i1 to i32
    %c0_i32_0 = arith.constant 0 : i32
    %2 = arith.cmpi ne, %1, %c0_i32_0 : i32
    scf.if %2 {
      %cst_17 = arith.constant 0.000000e+00 : f32
      %28 = vector.broadcast %cst_17 : f32 to vector<1x1xf32>
      %c0_18 = arith.constant 0 : index
      %c0_19 = arith.constant 0 : index
      %29 = vector.load %arg5[%c0_18, %c0_19] : memref<1x1xf32, #tpu.memory_space<vmem>>, vector<1x1xf32>
      tpu.vector_store %arg5[%c0_18, %c0_19], %28 {strides = array<i32>} : memref<1x1xf32, #tpu.memory_space<vmem>>, vector<1x1xf32>,
      %cst_20 = arith.constant 0.000000e+00 : f32
      %30 = vector.broadcast %cst_20 : f32 to vector<1x1xf32>
      %c0_21 = arith.constant 0 : index
      %c0_22 = arith.constant 0 : index
      %31 = vector.load %arg6[%c0_21, %c0_22] : memref<1x1xf32, #tpu.memory_space<vmem>>, vector<1x1xf32>
      tpu.vector_store %arg6[%c0_21, %c0_22], %30 {strides = array<i32>} : memref<1x1xf32, #tpu.memory_space<vmem>>, vector<1x1xf32>,
    } else {
    }
    %c0 = arith.constant 0 : index
    %c0_1 = arith.constant 0 : index
    %3 = vector.load %arg1[%c0, %c0_1] : memref<16x128xf32, #tpu.memory_space<vmem>>, vector<16x128xf32>
    %c0_2 = arith.constant 0 : index
    %c0_3 = arith.constant 0 : index
    %4 = vector.load %arg2[%c0_2, %c0_3] : memref<16x128xf32, #tpu.memory_space<vmem>>, vector<16x128xf32>
    %c0_4 = arith.constant 0 : index
    %c0_5 = arith.constant 0 : index
    %5 = vector.load %arg3[%c0_4, %c0_5] : memref<16x128xf32, #tpu.memory_space<vmem>>, vector<16x128xf32>
    %c0_6 = arith.constant 0 : index
    %c0_7 = arith.constant 0 : index
    %6 = vector.load %arg5[%c0_6, %c0_7] : memref<1x1xf32, #tpu.memory_space<vmem>>, vector<1x1xf32>
    %7 = arith.subf %3, %4 : vector<16x128xf32>
    %8 = math.absf %7 : vector<16x128xf32>
    %9 = arith.mulf %8, %5 : vector<16x128xf32>
    %10 = vector.shape_cast %9 : vector<16x128xf32> to vector<1x16x128xf32>
    %cst = arith.constant dense<0.000000e+00> : vector<1xf32>
    %11 = vector.multi_reduction <add>, %10, %cst [1, 2] : vector<1x16x128xf32> to vector<1xf32>
    %12 = vector.shape_cast %11 : vector<1xf32> to vector<1x1x1xf32>
    %13 = vector.extract %12[0, 0, 0] : f32 from vector<1x1x1xf32>
    %14 = vector.broadcast %13 : f32 to vector<1x1xf32>
    %15 = arith.addf %6, %14 : vector<1x1xf32>
    %c0_8 = arith.constant 0 : index
    %c0_9 = arith.constant 0 : index
    %16 = vector.load %arg5[%c0_8, %c0_9] : memref<1x1xf32, #tpu.memory_space<vmem>>, vector<1x1xf32>
    tpu.vector_store %arg5[%c0_8, %c0_9], %15 {strides = array<i32>} : memref<1x1xf32, #tpu.memory_space<vmem>>, vector<1x1xf32>,
    %c0_10 = arith.constant 0 : index
    %c0_11 = arith.constant 0 : index
    %17 = vector.load %arg6[%c0_10, %c0_11] : memref<1x1xf32, #tpu.memory_space<vmem>>, vector<1x1xf32>
    %18 = vector.shape_cast %5 : vector<16x128xf32> to vector<1x16x128xf32>
    %cst_12 = arith.constant dense<0.000000e+00> : vector<1xf32>
    %19 = vector.multi_reduction <add>, %18, %cst_12 [1, 2] : vector<1x16x128xf32> to vector<1xf32>
    %20 = vector.shape_cast %19 : vector<1xf32> to vector<1x1x1xf32>
    %21 = vector.extract %20[0, 0, 0] : f32 from vector<1x1x1xf32>
    %22 = vector.broadcast %21 : f32 to vector<1x1xf32>
    %23 = arith.addf %17, %22 : vector<1x1xf32>
    %c0_13 = arith.constant 0 : index
    %c0_14 = arith.constant 0 : index
    %24 = vector.load %arg6[%c0_13, %c0_14] : memref<1x1xf32, #tpu.memory_space<vmem>>, vector<1x1xf32>
    tpu.vector_store %arg6[%c0_13, %c0_14], %23 {strides = array<i32>} : memref<1x1xf32, #tpu.memory_space<vmem>>, vector<1x1xf32>,
    %c0_i32_15 = arith.constant 0 : i32
    %25 = arith.cmpi eq, %arg0, %c0_i32_15 : i32
    %26 = arith.extui %25 : i1 to i32
    %c0_i32_16 = arith.constant 0 : i32
    %27 = arith.cmpi ne, %26, %c0_i32_16 : i32
    scf.if %27 {
      %c0_17 = arith.constant 0 : index
      %c0_18 = arith.constant 0 : index
      %28 = vector.load %arg5[%c0_17, %c0_18] : memref<1x1xf32, #tpu.memory_space<vmem>>, vector<1x1xf32>
      %c0_19 = arith.constant 0 : index
      %c0_20 = arith.constant 0 : index
      %29 = vector.load %arg6[%c0_19, %c0_20] : memref<1x1xf32, #tpu.memory_space<vmem>>, vector<1x1xf32>
      %cst_21 = arith.constant 9.99999997E-7 : f32
      %30 = vector.broadcast %cst_21 : f32 to vector<1x1xf32>
      %31 = arith.addf %29, %30 : vector<1x1xf32>
      %32 = arith.divf %28, %31 : vector<1x1xf32>
      %c0_22 = arith.constant 0 : index
      %c0_23 = arith.constant 0 : index
      %33 = vector.load %arg4[%c0_22, %c0_23] : memref<1x1xf32, #tpu.memory_space<vmem>>, vector<1x1xf32>
      tpu.vector_store %arg4[%c0_22, %c0_23], %32 {strides = array<i32>} : memref<1x1xf32, #tpu.memory_space<vmem>>, vector<1x1xf32>,
    } else {
    }
    return
  }
  func.func @transform_0(%arg0: i32) -> (i32, i32) {
    %c0_i32 = arith.constant 0 : i32
    %c0_i32_0 = arith.constant 0 : i32
    return %arg0, %c0_i32 : i32, i32
  }
  func.func @transform_1(%arg0: i32) -> (i32, i32) {
    %c0_i32 = arith.constant 0 : i32
    %c0_i32_0 = arith.constant 0 : i32
    return %arg0, %c0_i32 : i32, i32
  }
  func.func @transform_2(%arg0: i32) -> (i32, i32) {
    %c0_i32 = arith.constant 0 : i32
    %c0_i32_0 = arith.constant 0 : i32
    return %arg0, %c0_i32 : i32, i32
  }
  func.func @transform_3(%arg0: i32) -> (i32, i32) {
    %c0_i32 = arith.constant 0 : i32
    %c0_i32_0 = arith.constant 0 : i32
    %c0_i32_1 = arith.constant 0 : i32
    return %c0_i32, %c0_i32_0 : i32, i32
  }
}

</mosaic_0001>

<llo_original>
// kernel: mask_l1_loss.1
$region0: #{mask_l1_loss.1}
  #allocation0 [shape = 'u32[]', space=smem, size = 0x4, offset = 0x4, fixed_abs, tag = 'smem constant byte address 0x4 - core index']
  #allocation1 [shape = 'u32[144,128]{1,0:T(1,128)}', space=vmem, size = 0x12000, scoped, tag = 'internal scratch']
  #allocation2 [shape = 'f32[1,1]{1,0:T(1,128)}', space=vmem, size = 0x200, scoped, tag = 'scratch operand']
  #allocation3 [shape = 'f32[1,1]{1,0:T(1,128)}', space=vmem, size = 0x200, scoped, tag = 'scratch operand']
  %s0 = inlined_call_operand.vmem [shape: f32[16,128], index: 0, kind: input, shape index: {}]
  %s1 = inlined_call_operand.vmem [shape: f32[16,128], index: 1, kind: input, shape index: {}]
  %s2 = inlined_call_operand.vmem [shape: f32[16,128], index: 2, kind: input, shape index: {}]
  %s3 = inlined_call_operand.hbm [shape: f32[1,1], index: 3, kind: output, shape index: {}]
  %s4 = sld [smem:[#allocation0]]
  $region30: #{mask_l1_loss.1} parent=0
    _
  %s6 = ssub.s32 1, %s4
  %s7 = scalar_select 0, %s6, %s4
  $region1: #{mask_l1_loss.1} parent=0
    #allocation4 [shape = 'u8[512]{0}', space=vmem, size = 0x400, scoped, tag = 'output window, operand 0, single buffered']
    #allocation5 [shape = 's32[1]{0}', space=sflag, size = 0x4, scoped, tag = 'scoped memory for mask_l1_loss.1']
    %8 = vsyncpa [#allocation5], 0
    // Predicated region
    $region2: #{mask_l1_loss.1} parent=1 // pred_check
      _
    $region3: #{mask_l1_loss.1} parent=1 // pred_check_branch
      %10 = sbr.rel (0) target = $region5
    $region4: #{mask_l1_loss.1} parent=1 // pred_region
      _
    $region5: #{mask_l1_loss.1} parent=1 // pred_fallthru
      _
    // Predicated region
    $region6: #{mask_l1_loss.1} parent=1 // pred_check
      _
    $region7: #{mask_l1_loss.1} parent=1 // pred_check_branch
      %12 = sbr.rel (0) target = $region9
    $region8: #{mask_l1_loss.1} parent=1 // pred_region
      _
    $region9: #{mask_l1_loss.1} parent=1 // pred_fallthru
      _
    // Predicated region
    $region10: #{mask_l1_loss.1} parent=1 // pred_check
      _
    $region11: #{mask_l1_loss.1} parent=1 // pred_check_branch
      %14 = sbr.rel (0) target = $region13
    $region12: #{mask_l1_loss.1} parent=1 // pred_region
      _
    $region13: #{mask_l1_loss.1} parent=1 // pred_fallthru
      _
    %p15 = scmp.eq.s32.totalorder 0, 0
    // Predicated region
    $region14: #{mask_l1_loss.1} parent=1 // pred_check
      %p16 = pneg %p15
    $region15: #{mask_l1_loss.1} parent=1 // pred_check_branch
      %18 = sbr.rel (%p16) target = $region17
    $region16: #{mask_l1_loss.1} parent=1 // pred_region
      %vm19 = vcmask 0
      %20 = vst.msk [vmem:[#allocation2] sm:$0x1] %vm19, 0.0
      %21 = vst.msk [vmem:[#allocation3] sm:$0x1] %vm19, 0.0
    $region17: #{mask_l1_loss.1} parent=1 // pred_fallthru
      _
    %v22 = vld [vmem:[%s0] sm:$0xff]
    %v23 = vld [vmem:[%s0 + $0x8] sm:$0xff]
    %v24 = vld [vmem:[%s1] sm:$0xff]
    %v25 = vld [vmem:[%s1 + $0x8] sm:$0xff]
    %v26 = vld [vmem:[%s2] sm:$0xff]
    %v27 = vld [vmem:[%s2 + $0x8] sm:$0xff]
    %v28 = vld [vmem:[#allocation2] sm:$0x1]
    %v29 = vsub.f32 %v22, %v24
    %v30 = vsub.f32 %v23, %v25
    %v31 = vand.u32 2147483647, %v29
    %v32 = vand.u32 2147483647, %v30
    %v33 = vmul.f32 %v31, %v26
    %v34 = vmul.f32 %v32, %v27
    %v35 = vadd.f32 %v33, %v34
    %36 = vadd.xlane.f32.xlu0 %v35
    %v37 = vpop.xlane.xlu0 %36
    %v38 = vrot.slane %v37, 4
    %v39 = vadd.f32 %v37, %v38
    %v40 = vrot.slane %v39, 2
    %v41 = vadd.f32 %v39, %v40
    %v42 = vrot.slane %v41, 1
    %v43 = vadd.f32 %v41, %v42
    %s44 = vtos %v43
    %v45 = vstv %s44
    %v46 = vadd.f32 %v28, %v45
    %vm47 = vcmask 0
    %48 = vst.msk [vmem:[#allocation2] sm:$0x1] %vm47, %v46
    %v49 = vld [vmem:[#allocation3] sm:$0x1]
    %v50 = vadd.f32 %v26, %v27
    %51 = vadd.xlane.f32.xlu0 %v50
    %v52 = vpop.xlane.xlu0 %51
    %v53 = vrot.slane %v52, 4
    %v54 = vadd.f32 %v52, %v53
    %v55 = vrot.slane %v54, 2
    %v56 = vadd.f32 %v54, %v55
    %v57 = vrot.slane %v56, 1
    %v58 = vadd.f32 %v56, %v57
    %s59 = vtos %v58
    %v60 = vstv %s59
    %v61 = vadd.f32 %v49, %v60
    %62 = vst.msk [vmem:[#allocation3] sm:$0x1] %vm47, %v61
    // Predicated region
    $region18: #{mask_l1_loss.1} parent=1 // pred_check
      %p63 = pneg %p15
    $region19: #{mask_l1_loss.1} parent=1 // pred_check_branch
      %65 = sbr.rel (%p63) target = $region21
    $region20: #{mask_l1_loss.1} parent=1 // pred_region
      %v66 = vld [vmem:[#allocation2] sm:$0x1]
      %v67 = vld [vmem:[#allocation3] sm:$0x1]
      %v68 = vadd.f32 %v67, 1e-06
      %v69 = vrcp.pop %v68
      %v70 = vmul.f32 %v66, %v69
      %71 = vst.msk [vmem:[#allocation4] sm:$0x1] %vm47, %v70
    $region21: #{mask_l1_loss.1} parent=1 // pred_fallthru
      _
    // Predicated region
    $region22: #{mask_l1_loss.1} parent=1 // pred_check
      _
    $region23: #{mask_l1_loss.1} parent=1 // pred_check_branch
      %73 = sbr.rel (0) target = $region25
    $region24: #{mask_l1_loss.1} parent=1 // pred_region
      %s75 = ssub.s32 16, 16
      %76 = vsyncadd [#allocation5], %s75
      %s78 = sshll.u32 [#allocation4], 4
      %s79 = int_to_ptr.vmem [resolvable:$true] %s78
      %81 = dma.vmem_to_hbm [thread:$0]  %s79, 16, %s3, [#allocation5]
    $region25: #{mask_l1_loss.1} parent=1 // pred_fallthru
      _
    // Predicated region
    $region26: #{mask_l1_loss.1} parent=1 // pred_check
      _
    $region27: #{mask_l1_loss.1} parent=1 // pred_check_branch
      %83 = sbr.rel (0) target = $region29
    $region28: #{mask_l1_loss.1} parent=1 // pred_region
      %84 = dma.done [#allocation5], 16
    $region29: #{mask_l1_loss.1} parent=1 // pred_fallthru
      _
    %85 = vsyncpa [#allocation5], 1

</llo_original>
